<compile_context>
chip_gen: v7x
topology: tpu7x:2x2x1
jax: 0.10.0
libtpu: 0.0.40
codegen_flags: <defaults>
</compile_context>

<pallas_src>
import jax
import jax.numpy as jnp
from jax.experimental import pallas as pl
from jax.experimental.pallas import tpu as pltpu

OUT_PAD = 128   # lane-dense width of the kernel's logits block
LANE = 128
SUBLANE = 8


def _round_up(x, m):
    return ((x + m - 1) // m) * m


def _cdiv(a, b):
    return (a + b - 1) // b


# ----------------------------------------------------------------------------
# Pallas kernel
# ----------------------------------------------------------------------------
def _make_kernel(filter_sizes, n_pads, L, L_pad, total_cols, matmul_dtype):
    filter_sizes = tuple(filter_sizes)
    n_pads = tuple(n_pads)

    def kernel(emb_ref, wconv_ref, bconv_ref, wh_ref, bh_ref, wo_ref, bo_ref,
               out_ref):
        rows, _ = emb_ref.shape          # (bt * L_pad, E_pad)
        bt = rows // L_pad

        # --- one wide conv matmul over the whole (pre-flattened) batch tile ---
        y = jnp.dot(emb_ref[...], wconv_ref[...],
                    preferred_element_type=jnp.float32)       # (bt*L_pad, C) f32
        # layout-exact view split: L_pad % 8 == 0 and C % 128 == 0
        y = y.reshape(bt, L_pad, total_cols)

        # --- combine shifted, lane-aligned column blocks + max over positions -
        maxes = []
        col = 0
        for f, n_pad in zip(filter_sizes, n_pads):
            l_out = L - f + 1                                  # real positions
            acc = y[:, 0:l_out, col:col + n_pad]
            for j in range(1, f):
                acc = acc + y[:, j:j + l_out,
                              col + j * n_pad: col + (j + 1) * n_pad]
            maxes.append(jnp.max(acc, axis=1))                 # (bt, n_pad)
            col += f * n_pad

        # bias + ReLU after the max (relu(x+b) is monotone in x, b const in t).
        feat = jnp.maximum(jnp.concatenate(maxes, axis=-1) + bconv_ref[...],
                           0.0)                                # (bt, F_pad) f32

        # --- highway layer: bf16 MXU matmul, f32 elementwise -------------------
        hw = jnp.dot(feat.astype(matmul_dtype), wh_ref[...],
                     preferred_element_type=jnp.float32) + bh_ref[...]
        sig = jax.nn.sigmoid(hw)
        pred = sig * jnp.maximum(hw, 0.0) + (1.0 - sig) * feat

        # dropout == identity at inference
        # --- feature2out into a lane-dense 128-wide output block ---------------
        out_ref[...] = (jnp.dot(pred.astype(matmul_dtype), wo_ref[...],
                                preferred_element_type=jnp.float32)
                        + bo_ref[...])

    return kernel


# ----------------------------------------------------------------------------
# Wrapper
# ----------------------------------------------------------------------------
def cnn_discriminator_forward(emb, conv_ws, conv_bs, wh, bh, wo, bo,
                              filter_sizes, num_filters,
                              batch_tile=256, matmul_dtype=jnp.bfloat16):
    """emb: (B, L, E) float32 embedded input.  Returns (B, 2) float32 logits."""
    B, L, E = emb.shape
    filter_sizes = tuple(filter_sizes)
    num_filters = tuple(num_filters)

    # ---- padded geometry -----------------------------------------------------
    E_pad = _round_up(E, LANE)
    L_pad = _round_up(L, SUBLANE)
    n_pads = [_round_up(n, LANE) for n in num_filters]
    F_pad = sum(n_pads)
    total_cols = sum(f * n_pad for f, n_pad in zip(filter_sizes, n_pads))

    # mapping from real (compact) feature index -> lane-padded feature index
    pad_offsets, off = [], 0
    for n_pad in n_pads:
        pad_offsets.append(off)
        off += n_pad
    idx = jnp.concatenate([o + jnp.arange(n, dtype=jnp.int32)
                           for o, n in zip(pad_offsets, num_filters)])

    # ---- host-side weight packing (done once, free) --------------------------
    # Column block for (filter i, shift j) holds W_i[:, j, :].T at columns
    # col_i + j*n_pad_i + channel; channels >= n_i are zero (lane padding).
    blocks = []
    for w, n_pad in zip(conv_ws, n_pads):
        n, f, _ = w.shape
        wt = jnp.transpose(w, (2, 1, 0))                       # (E, f, n)
        wt = jnp.pad(wt, ((0, E_pad - E), (0, 0), (0, n_pad - n)))
        blocks.append(wt.reshape(E_pad, f * n_pad))
    wconv = jnp.concatenate(blocks, axis=1).astype(matmul_dtype)   # (E_pad, C)

    bconv = jnp.concatenate(
        [jnp.pad(b, (0, n_pad - b.shape[0]))
         for b, n_pad in zip(conv_bs, n_pads)]).reshape(1, F_pad).astype(jnp.float32)

    # highway / output weights scattered into the lane-padded feature space
    wh_p = jnp.zeros((F_pad, F_pad), jnp.float32).at[
        idx[:, None], idx[None, :]].set(wh.T).astype(matmul_dtype)
    bh_p = jnp.zeros((F_pad,), jnp.float32).at[idx].set(bh).reshape(1, F_pad)
    wo_p = jnp.zeros((F_pad, OUT_PAD), jnp.float32).at[
        idx[:, None], jnp.arange(2, dtype=jnp.int32)[None, :]].set(
            wo.T).astype(matmul_dtype)
    bo_p = jnp.zeros((1, OUT_PAD), jnp.float32).at[0, :2].set(bo)

    # ---- balanced batch tiling (tiles are multiples of 8 sublanes) ------------
    n_tiles = max(1, _cdiv(B, batch_tile))
    bt = _round_up(_cdiv(B, n_tiles), SUBLANE)
    B_pad = n_tiles * bt

    emb_p = jnp.pad(emb, ((0, B_pad - B), (0, L_pad - L), (0, E_pad - E)))
    emb_flat = emb_p.reshape(B_pad * L_pad, E_pad).astype(matmul_dtype)

    kernel = _make_kernel(filter_sizes, n_pads, L, L_pad, total_cols,
                          matmul_dtype)

    weight_args = [wconv, bconv, wh_p, bh_p, wo_p, bo_p]
    # NOTE: invariant-index weight blocks; on v7x one could add
    # pipeline_mode=pl.Buffered(1) to avoid 2x VMEM for them.
    weight_specs = [pl.BlockSpec(a.shape, lambda b: (0, 0)) for a in weight_args]

    # ---- explicit VMEM budget (double-buffered IO + weights + intermediates) --
    in_block = bt * L_pad * E_pad * 2 * 2
    out_block = bt * OUT_PAD * 4 * 2
    w_bytes = 2 * sum(int(a.size) * a.dtype.itemsize for a in weight_args)
    y_interm = bt * L_pad * total_cols * 4
    tmps = 4 * bt * max(L_pad * max(n_pads), F_pad) * 4
    vmem_limit = int((in_block + out_block + w_bytes + y_interm + tmps) * 1.5)
    vmem_limit = max(32 << 20, min(vmem_limit + (4 << 20), 100 << 20))

    out = pl.pallas_call(
        kernel,
        out_shape=jax.ShapeDtypeStruct((B_pad, OUT_PAD), jnp.float32),
        grid=(n_tiles,),
        in_specs=[pl.BlockSpec((bt * L_pad, E_pad), lambda b: (b, 0))]
                 + weight_specs,
        out_specs=pl.BlockSpec((bt, OUT_PAD), lambda b: (b, 0)),
        compiler_params=pltpu.CompilerParams(
            dimension_semantics=("parallel",),
            vmem_limit_bytes=vmem_limit),
    )(emb_flat, *weight_args)

    return out[:B, :2]


# ----------------------------------------------------------------------------
# Pure-JAX f32 reference (PyTorch semantics) for correctness check
# ----------------------------------------------------------------------------
def reference_forward(emb, conv_ws, conv_bs, wh, bh, wo, bo,
                      filter_sizes, num_filters):
    B, L, E = emb.shape
    pools = []
    for w, b, f in zip(conv_ws, conv_bs, filter_sizes):
        l_out = L - f + 1
        acc = jnp.zeros((B, l_out, w.shape[0]), jnp.float32)
        for j in range(f):
            acc = acc + jnp.einsum('ble,ne->bln',
                                   emb[:, j:j + l_out, :], w[:, j, :])
        acc = jnp.maximum(acc + b[None, None, :], 0.0)
        pools.append(jnp.max(acc, axis=1))
    feat = jnp.concatenate(pools, axis=-1)
    hw = feat @ wh.T + bh
    sig = jax.nn.sigmoid(hw)
    pred = sig * jnp.maximum(hw, 0.0) + (1.0 - sig) * feat
    return pred @ wo.T + bo


# ----------------------------------------------------------------------------
# main
# ----------------------------------------------------------------------------
if __name__ == "__main__":
    # small, module-consistent shapes
    batch = 2
    seq_len = 8
    vocab_size = 20
    embed_dim = 32
    filter_sizes = (2, 3)
    num_filters = (16, 16)
    padding_idx = 0
    feature_dim = sum(num_filters)

    key = jax.random.PRNGKey(0)
    keys = jax.random.split(key, 10)

    # deterministic 'uniform' init (a=-0.05, b=0.05), mirroring init_params()
    def uni(k, shape):
        return jax.random.uniform(k, shape, jnp.float32, -0.05, 0.05)

    emb_table = uni(keys[0], (vocab_size, embed_dim))
    emb_table = emb_table.at[padding_idx].set(0.0)     # padding_idx row is zero

    conv_ws, conv_bs = [], []
    for i, (n, f) in enumerate(zip(num_filters, filter_sizes)):
        # PyTorch Conv2d weight (n, 1, f, E) -> (n, f, E)
        conv_ws.append(uni(keys[1 + 2 * i], (n, f, embed_dim)))
        conv_bs.append(uni(keys[2 + 2 * i], (n,)))

    wh = uni(keys[5], (feature_dim, feature_dim))
    bh = uni(keys[6], (feature_dim,))
    wo = uni(keys[7], (2, feature_dim))
    bo = uni(keys[8], (2,))

    # input tokens (batch_size * seq_len)
    inp = jax.random.randint(keys[9], (batch, seq_len), 0, vocab_size, jnp.int32)

    # embedding lookup (gather) done as plain-JAX glue
    emb = emb_table[inp].astype(jnp.float32)           # (B, L, E)

    out = cnn_discriminator_forward(emb, conv_ws, conv_bs, wh, bh, wo, bo,
                                    filter_sizes, num_filters)
    out = jax.block_until_ready(out)

    ref = reference_forward(emb, conv_ws, conv_bs, wh, bh, wo, bo,
                            filter_sizes, num_filters)
    assert out.shape == (batch, 2), out.shape
    # bf16 inputs to all three matmuls (f32 accumulation): loose-but-documented
    # tolerance; acceptable for a GAN discriminator head.
    assert jnp.allclose(out, ref, rtol=3e-2, atol=3e-3), (out, ref)

    print("KERNEL_OK")
</pallas_src>

<mosaic_0001>
module attributes {stable_mosaic.version = 11 : i64} {
  func.func @kernel(%arg0: i32, %arg1: memref<64x128xbf16, #tpu.memory_space<vmem>>, %arg2: memref<128x640xbf16, #tpu.memory_space<vmem>>, %arg3: memref<1x256xf32, #tpu.memory_space<vmem>>, %arg4: memref<256x256xbf16, #tpu.memory_space<vmem>>, %arg5: memref<1x256xf32, #tpu.memory_space<vmem>>, %arg6: memref<256x128xbf16, #tpu.memory_space<vmem>>, %arg7: memref<1x128xf32, #tpu.memory_space<vmem>>, %arg8: memref<8x128xf32, #tpu.memory_space<vmem>>) attributes {dimension_semantics = [#tpu.dimension_semantics<parallel>], iteration_bounds = array<i64: 1>, scalar_prefetch = 0 : i64, scratch_operands = 0 : i64, tpu.core_type = #tpu.core_type<tc>, window_params = [{transform_indices = @transform_0, window_bounds = array<i64: 64, 128>}, {pipeline_mode = #tpu.pipeline_mode<synchronous>, transform_indices = @transform_1, window_bounds = array<i64: 128, 640>}, {pipeline_mode = #tpu.pipeline_mode<synchronous>, transform_indices = @transform_2, window_bounds = array<i64: 1, 256>}, {pipeline_mode = #tpu.pipeline_mode<synchronous>, transform_indices = @transform_3, window_bounds = array<i64: 256, 256>}, {pipeline_mode = #tpu.pipeline_mode<synchronous>, transform_indices = @transform_4, window_bounds = array<i64: 1, 256>}, {pipeline_mode = #tpu.pipeline_mode<synchronous>, transform_indices = @transform_5, window_bounds = array<i64: 256, 128>}, {pipeline_mode = #tpu.pipeline_mode<synchronous>, transform_indices = @transform_6, window_bounds = array<i64: 1, 128>}, {transform_indices = @transform_7, window_bounds = array<i64: 8, 128>}]} {
    %c0 = arith.constant 0 : index
    %c0_0 = arith.constant 0 : index
    %0 = vector.load %arg1[%c0, %c0_0] : memref<64x128xbf16, #tpu.memory_space<vmem>>, vector<64x128xbf16>
    %c0_1 = arith.constant 0 : index
    %c0_2 = arith.constant 0 : index
    %1 = vector.load %arg2[%c0_1, %c0_2] : memref<128x640xbf16, #tpu.memory_space<vmem>>, vector<128x640xbf16>
    %cst = arith.constant dense<0.000000e+00> : vector<64x640xf32>
    %2 = tpu.matmul %0, %1, %cst {dimension_numbers = #tpu.dot_dimension_numbers<[1], [0], [0], [1], [0, 0, 1, 1], [], []>} : vector<64x128xbf16>, vector<128x640xbf16>, vector<64x640xf32> -> vector<64x640xf32>
    %3 = vector.shape_cast %2 : vector<64x640xf32> to vector<8x8x640xf32>
    %4 = vector.extract_strided_slice %3 {offsets = [0, 0, 0], sizes = [8, 7, 128], strides = [1, 1, 1]} : vector<8x8x640xf32> to vector<8x7x128xf32>
    %5 = vector.extract_strided_slice %3 {offsets = [0, 1, 128], sizes = [8, 7, 128], strides = [1, 1, 1]} : vector<8x8x640xf32> to vector<8x7x128xf32>
    %6 = arith.addf %4, %5 : vector<8x7x128xf32>
    %cst_3 = arith.constant dense<0xFF800000> : vector<8x128xf32>
    %7 = vector.multi_reduction <maximumf>, %6, %cst_3 [1] : vector<8x7x128xf32> to vector<8x128xf32>
    %8 = vector.extract_strided_slice %3 {offsets = [0, 0, 256], sizes = [8, 6, 128], strides = [1, 1, 1]} : vector<8x8x640xf32> to vector<8x6x128xf32>
    %9 = vector.extract_strided_slice %3 {offsets = [0, 1, 384], sizes = [8, 6, 128], strides = [1, 1, 1]} : vector<8x8x640xf32> to vector<8x6x128xf32>
    %10 = arith.addf %8, %9 : vector<8x6x128xf32>
    %11 = vector.extract_strided_slice %3 {offsets = [0, 2, 512], sizes = [8, 6, 128], strides = [1, 1, 1]} : vector<8x8x640xf32> to vector<8x6x128xf32>
    %12 = arith.addf %10, %11 : vector<8x6x128xf32>
    %cst_4 = arith.constant dense<0xFF800000> : vector<8x128xf32>
    %13 = vector.multi_reduction <maximumf>, %12, %cst_4 [1] : vector<8x6x128xf32> to vector<8x128xf32>
    %14 = tpu.concatenate %7, %13 in 1 : vector<8x128xf32>, vector<8x128xf32> -> vector<8x256xf32>
    %c0_5 = arith.constant 0 : index
    %c0_6 = arith.constant 0 : index
    %15 = vector.load %arg3[%c0_5, %c0_6] : memref<1x256xf32, #tpu.memory_space<vmem>>, vector<1x256xf32>
    %16 = vector.broadcast %15 : vector<1x256xf32> to vector<8x256xf32>
    %17 = arith.addf %14, %16 : vector<8x256xf32>
    %cst_7 = arith.constant 0.000000e+00 : f32
    %18 = vector.broadcast %cst_7 : f32 to vector<8x256xf32>
    %19 = arith.maximumf %17, %18 : vector<8x256xf32>
    %20 = arith.truncf %19 : vector<8x256xf32> to vector<8x256xbf16>
    %c0_8 = arith.constant 0 : index
    %c0_9 = arith.constant 0 : index
    %21 = vector.load %arg4[%c0_8, %c0_9] : memref<256x256xbf16, #tpu.memory_space<vmem>>, vector<256x256xbf16>
    %cst_10 = arith.constant dense<0.000000e+00> : vector<8x256xf32>
    %22 = tpu.matmul %20, %21, %cst_10 {dimension_numbers = #tpu.dot_dimension_numbers<[1], [0], [0], [1], [0, 0, 1, 1], [], []>} : vector<8x256xbf16>, vector<256x256xbf16>, vector<8x256xf32> -> vector<8x256xf32>
    %c0_11 = arith.constant 0 : index
    %c0_12 = arith.constant 0 : index
    %23 = vector.load %arg5[%c0_11, %c0_12] : memref<1x256xf32, #tpu.memory_space<vmem>>, vector<1x256xf32>
    %24 = vector.broadcast %23 : vector<1x256xf32> to vector<8x256xf32>
    %25 = arith.addf %22, %24 : vector<8x256xf32>
    %26 = arith.negf %25 : vector<8x256xf32>
    %27 = math.exp %26 : vector<8x256xf32>
    %cst_13 = arith.constant 1.000000e+00 : f32
    %28 = vector.broadcast %cst_13 : f32 to vector<8x256xf32>
    %29 = arith.addf %28, %27 : vector<8x256xf32>
    %30 = arith.divf %28, %29 : vector<8x256xf32>
    %cst_14 = arith.constant 0.000000e+00 : f32
    %31 = vector.broadcast %cst_14 : f32 to vector<8x256xf32>
    %32 = arith.maximumf %25, %31 : vector<8x256xf32>
    %33 = arith.mulf %30, %32 : vector<8x256xf32>
    %cst_15 = arith.constant 1.000000e+00 : f32
    %34 = vector.broadcast %cst_15 : f32 to vector<8x256xf32>
    %35 = arith.subf %34, %30 : vector<8x256xf32>
    %36 = arith.mulf %35, %19 : vector<8x256xf32>
    %37 = arith.addf %33, %36 : vector<8x256xf32>
    %38 = arith.truncf %37 : vector<8x256xf32> to vector<8x256xbf16>
    %c0_16 = arith.constant 0 : index
    %c0_17 = arith.constant 0 : index
    %39 = vector.load %arg6[%c0_16, %c0_17] : memref<256x128xbf16, #tpu.memory_space<vmem>>, vector<256x128xbf16>
    %cst_18 = arith.constant dense<0.000000e+00> : vector<8x128xf32>
    %40 = tpu.matmul %38, %39, %cst_18 {dimension_numbers = #tpu.dot_dimension_numbers<[1], [0], [0], [1], [0, 0, 1, 1], [], []>} : vector<8x256xbf16>, vector<256x128xbf16>, vector<8x128xf32> -> vector<8x128xf32>
    %c0_19 = arith.constant 0 : index
    %c0_20 = arith.constant 0 : index
    %41 = vector.load %arg7[%c0_19, %c0_20] : memref<1x128xf32, #tpu.memory_space<vmem>>, vector<1x128xf32>
    %42 = vector.broadcast %41 : vector<1x128xf32> to vector<8x128xf32>
    %43 = arith.addf %40, %42 : vector<8x128xf32>
    %c0_21 = arith.constant 0 : index
    %c0_22 = arith.constant 0 : index
    %44 = vector.load %arg8[%c0_21, %c0_22] : memref<8x128xf32, #tpu.memory_space<vmem>>, vector<8x128xf32>
    tpu.vector_store %arg8[%c0_21, %c0_22], %43 {strides = array<i32>} : memref<8x128xf32, #tpu.memory_space<vmem>>, vector<8x128xf32>,
    return
  }
  func.func @transform_0(%arg0: i32) -> (i32, i32) {
    %c0_i32 = arith.constant 0 : i32
    %c0_i32_0 = arith.constant 0 : i32
    return %arg0, %c0_i32 : i32, i32
  }
  func.func @transform_1(%arg0: i32) -> (i32, i32) {
    %c0_i32 = arith.constant 0 : i32
    %c0_i32_0 = arith.constant 0 : i32
    %c0_i32_1 = arith.constant 0 : i32
    return %c0_i32, %c0_i32_0 : i32, i32
  }
  func.func @transform_2(%arg0: i32) -> (i32, i32) {
    %c0_i32 = arith.constant 0 : i32
    %c0_i32_0 = arith.constant 0 : i32
    %c0_i32_1 = arith.constant 0 : i32
    return %c0_i32, %c0_i32_0 : i32, i32
  }
  func.func @transform_3(%arg0: i32) -> (i32, i32) {
    %c0_i32 = arith.constant 0 : i32
    %c0_i32_0 = arith.constant 0 : i32
    %c0_i32_1 = arith.constant 0 : i32
    return %c0_i32, %c0_i32_0 : i32, i32
  }
  func.func @transform_4(%arg0: i32) -> (i32, i32) {
    %c0_i32 = arith.constant 0 : i32
    %c0_i32_0 = arith.constant 0 : i32
    %c0_i32_1 = arith.constant 0 : i32
    return %c0_i32, %c0_i32_0 : i32, i32
  }
  func.func @transform_5(%arg0: i32) -> (i32, i32) {
    %c0_i32 = arith.constant 0 : i32
    %c0_i32_0 = arith.constant 0 : i32
    %c0_i32_1 = arith.constant 0 : i32
    return %c0_i32, %c0_i32_0 : i32, i32
  }
  func.func @transform_6(%arg0: i32) -> (i32, i32) {
    %c0_i32 = arith.constant 0 : i32
    %c0_i32_0 = arith.constant 0 : i32
    %c0_i32_1 = arith.constant 0 : i32
    return %c0_i32, %c0_i32_0 : i32, i32
  }
  func.func @transform_7(%arg0: i32) -> (i32, i32) {
    %c0_i32 = arith.constant 0 : i32
    %c0_i32_0 = arith.constant 0 : i32
    return %arg0, %c0_i32 : i32, i32
  }
}

</mosaic_0001>

<llo_original>
// kernel: tpu_custom_call.1
$region0: #{tpu_custom_call.1}
  #allocation0 [shape = 'u32[]', space=smem, size = 0x4, offset = 0x4, fixed_abs, tag = 'smem constant byte address 0x4 - core index']
  #allocation1 [shape = 'u32[144,128]{1,0:T(1,128)}', space=vmem, size = 0x12000, scoped, tag = 'internal scratch']
  %s0 = inlined_call_operand.hbm [shape: bf16[64,128], index: 0, kind: input, shape index: {}]
  %s1 = inlined_call_operand.hbm [shape: bf16[128,640], index: 1, kind: input, shape index: {}]
  %s2 = inlined_call_operand.vmem [shape: f32[1,256], index: 2, kind: input, shape index: {}]
  %s3 = inlined_call_operand.hbm [shape: bf16[256,256], index: 3, kind: input, shape index: {}]
  %s4 = inlined_call_operand.vmem [shape: f32[1,256], index: 4, kind: input, shape index: {}]
  %s5 = inlined_call_operand.hbm [shape: bf16[256,128], index: 5, kind: input, shape index: {}]
  %s6 = inlined_call_operand.vmem [shape: f32[1,128], index: 6, kind: input, shape index: {}]
  %s7 = inlined_call_operand.hbm [shape: f32[8,128], index: 7, kind: output, shape index: {}]
  %s8 = sld [smem:[#allocation0]]
  $region54: #{tpu_custom_call.1} parent=0
    _
  %s10 = ssub.s32 1, %s8
  %s11 = scalar_select 0, %s10, %s8
  $region1: #{tpu_custom_call.1} parent=0
    #allocation2 [shape = 'u8[16384]{0}', space=vmem, size = 0x4000, scoped, tag = 'input window, operand 0, single buffered']
    #allocation3 [shape = 's32[1]{0}', space=sflag, size = 0x4, scoped, tag = 'scoped memory for tpu_custom_call.1']
    #allocation4 [shape = 's32[1]{0}', space=sflag, size = 0x4, scoped, tag = 'scoped memory for tpu_custom_call.1']
    #allocation5 [shape = 'u8[163840]{0}', space=vmem, size = 0x28000, scoped, tag = 'input window, operand 1, single buffered']
    #allocation6 [shape = 's32[1]{0}', space=sflag, size = 0x4, scoped, tag = 'scoped memory for tpu_custom_call.1']
    #allocation7 [shape = 'u8[131072]{0}', space=vmem, size = 0x20000, scoped, tag = 'input window, operand 3, single buffered']
    #allocation8 [shape = 'u8[65536]{0}', space=vmem, size = 0x10000, scoped, tag = 'input window, operand 5, single buffered']
    #allocation9 [shape = 's32[1]{0}', space=sflag, size = 0x4, scoped, tag = 'scoped memory for tpu_custom_call.1']
    #allocation10 [shape = 'u8[4096]{0}', space=vmem, size = 0x1000, scoped, tag = 'output window, operand 0, single buffered']
    %12 = vsyncpa [#allocation3], 0
    %13 = vsyncpa [#allocation6], 0
    %14 = vsyncpa [#allocation9], 0
    %15 = vsyncpa [#allocation4], 0
    // Predicated region
    $region2: #{tpu_custom_call.1} parent=1 // pred_check
      _
    $region3: #{tpu_custom_call.1} parent=1 // pred_check_branch
      %17 = sbr.rel (0) target = $region5
    $region4: #{tpu_custom_call.1} parent=1 // pred_region
      %s19 = ssub.s32 512, 512
      %20 = vsyncadd [#allocation3], %s19
      %s21 = sshll.u32 [#allocation2], 4
      %s22 = int_to_ptr.vmem [resolvable:$true] %s21
      %27 = dma.hbm_to_vmem [thread:$0]  %s0, 512, %s22, [#allocation3], 64, 64, 4
    $region5: #{tpu_custom_call.1} parent=1 // pred_fallthru
      _
    // Predicated region
    $region6: #{tpu_custom_call.1} parent=1 // pred_check
      _
    $region7: #{tpu_custom_call.1} parent=1 // pred_check_branch
      %29 = sbr.rel (0) target = $region9
    $region8: #{tpu_custom_call.1} parent=1 // pred_region
      %s31 = ssub.s32 5120, 5120
      %32 = vsyncadd [#allocation6], %s31
      %s33 = sshll.u32 [#allocation5], 4
      %s34 = int_to_ptr.vmem [resolvable:$true] %s33
      %39 = dma.hbm_to_vmem [thread:$0]  %s1, 5120, %s34, [#allocation6], 320, 320, 20
    $region9: #{tpu_custom_call.1} parent=1 // pred_fallthru
      _
    // Predicated region
    $region10: #{tpu_custom_call.1} parent=1 // pred_check
      _
    $region11: #{tpu_custom_call.1} parent=1 // pred_check_branch
      %41 = sbr.rel (0) target = $region13
    $region12: #{tpu_custom_call.1} parent=1 // pred_region
      _
    $region13: #{tpu_custom_call.1} parent=1 // pred_fallthru
      _
    // Predicated region
    $region14: #{tpu_custom_call.1} parent=1 // pred_check
      _
    $region15: #{tpu_custom_call.1} parent=1 // pred_check_branch
      %43 = sbr.rel (0) target = $region17
    $region16: #{tpu_custom_call.1} parent=1 // pred_region
      %s45 = ssub.s32 4096, 4096
      %46 = vsyncadd [#allocation6], %s45
      %s47 = sshll.u32 [#allocation7], 4
      %s48 = int_to_ptr.vmem [resolvable:$true] %s47
      %53 = dma.hbm_to_vmem [thread:$0]  %s3, 4096, %s48, [#allocation6], 128, 128, 8
    $region17: #{tpu_custom_call.1} parent=1 // pred_fallthru
      _
    // Predicated region
    $region18: #{tpu_custom_call.1} parent=1 // pred_check
      _
    $region19: #{tpu_custom_call.1} parent=1 // pred_check_branch
      %55 = sbr.rel (0) target = $region21
    $region20: #{tpu_custom_call.1} parent=1 // pred_region
      _
    $region21: #{tpu_custom_call.1} parent=1 // pred_fallthru
      _
    // Predicated region
    $region22: #{tpu_custom_call.1} parent=1 // pred_check
      _
    $region23: #{tpu_custom_call.1} parent=1 // pred_check_branch
      %57 = sbr.rel (0) target = $region25
    $region24: #{tpu_custom_call.1} parent=1 // pred_region
      %s59 = ssub.s32 2048, 2048
      %60 = vsyncadd [#allocation9], %s59
      %s61 = sshll.u32 [#allocation8], 4
      %s62 = int_to_ptr.vmem [resolvable:$true] %s61
      %67 = dma.hbm_to_vmem [thread:$0]  %s5, 2048, %s62, [#allocation9], 64, 64, 4
    $region25: #{tpu_custom_call.1} parent=1 // pred_fallthru
      _
    // Predicated region
    $region26: #{tpu_custom_call.1} parent=1 // pred_check
      _
    $region27: #{tpu_custom_call.1} parent=1 // pred_check_branch
      %69 = sbr.rel (0) target = $region29
    $region28: #{tpu_custom_call.1} parent=1 // pred_region
      _
    $region29: #{tpu_custom_call.1} parent=1 // pred_fallthru
      _
    // Predicated region
    $region30: #{tpu_custom_call.1} parent=1 // pred_check
      _
    $region31: #{tpu_custom_call.1} parent=1 // pred_check_branch
      %71 = sbr.rel (0) target = $region33
    $region32: #{tpu_custom_call.1} parent=1 // pred_region
      %72 = dma.done [#allocation3], 512
    $region33: #{tpu_custom_call.1} parent=1 // pred_fallthru
      _
    // Predicated region
    $region34: #{tpu_custom_call.1} parent=1 // pred_check
      _
    $region35: #{tpu_custom_call.1} parent=1 // pred_check_branch
      %74 = sbr.rel (0) target = $region37
    $region36: #{tpu_custom_call.1} parent=1 // pred_region
      %75 = dma.done [#allocation6], 5120
    $region37: #{tpu_custom_call.1} parent=1 // pred_fallthru
      _
    // Predicated region
    $region38: #{tpu_custom_call.1} parent=1 // pred_check
      _
    $region39: #{tpu_custom_call.1} parent=1 // pred_check_branch
      %77 = sbr.rel (0) target = $region41
    $region40: #{tpu_custom_call.1} parent=1 // pred_region
      %78 = dma.done [#allocation6], 4096
    $region41: #{tpu_custom_call.1} parent=1 // pred_fallthru
      _
    // Predicated region
    $region42: #{tpu_custom_call.1} parent=1 // pred_check
      _
    $region43: #{tpu_custom_call.1} parent=1 // pred_check_branch
      %80 = sbr.rel (0) target = $region45
    $region44: #{tpu_custom_call.1} parent=1 // pred_region
      %81 = dma.done [#allocation9], 2048
    $region45: #{tpu_custom_call.1} parent=1 // pred_fallthru
      _
    %v83 = vld [vmem:[#allocation2] sm:$0xf]
    %v84 = vld [vmem:[#allocation2 + $0x4] sm:$0xf]
    %v85 = vld [vmem:[#allocation2 + $0x8] sm:$0xf]
    %v86 = vld [vmem:[#allocation2 + $0xc] sm:$0xf]
    %v87 = vld [vmem:[#allocation2 + $0x10] sm:$0xf]
    %v88 = vld [vmem:[#allocation2 + $0x14] sm:$0xf]
    %v89 = vld [vmem:[#allocation2 + $0x18] sm:$0xf]
    %v90 = vld [vmem:[#allocation2 + $0x1c] sm:$0xf]
    %v91 = vld [vmem:[#allocation5] sm:$0xff]
    %v92 = vld [vmem:[#allocation5 + $0x8] sm:$0xff]
    %v93 = vld [vmem:[#allocation5 + $0x10] sm:$0xf]
    %v94 = vld [vmem:[#allocation5 + $0x14] sm:$0xff]
    %v95 = vld [vmem:[#allocation5 + $0x1c] sm:$0xff]
    %v96 = vld [vmem:[#allocation5 + $0x24] sm:$0xf]
    %v97 = vld [vmem:[#allocation5 + $0x28] sm:$0xff]
    %v98 = vld [vmem:[#allocation5 + $0x30] sm:$0xff]
    %v99 = vld [vmem:[#allocation5 + $0x38] sm:$0xf]
    %v100 = vld [vmem:[#allocation5 + $0x3c] sm:$0xff]
    %v101 = vld [vmem:[#allocation5 + $0x44] sm:$0xff]
    %v102 = vld [vmem:[#allocation5 + $0x4c] sm:$0xf]
    %v103 = vld [vmem:[#allocation5 + $0x50] sm:$0xff]
    %v104 = vld [vmem:[#allocation5 + $0x58] sm:$0xff]
    %v105 = vld [vmem:[#allocation5 + $0x60] sm:$0xf]
    %v106 = vld [vmem:[#allocation5 + $0x64] sm:$0xff]
    %v107 = vld [vmem:[#allocation5 + $0x6c] sm:$0xff]
    %v108 = vld [vmem:[#allocation5 + $0x74] sm:$0xf]
    %v109 = vld [vmem:[#allocation5 + $0x78] sm:$0xff]
    %v110 = vld [vmem:[#allocation5 + $0x80] sm:$0xff]
    %v111 = vld [vmem:[#allocation5 + $0x88] sm:$0xf]
    %v112 = vld [vmem:[#allocation5 + $0x8c] sm:$0xff]
    %v113 = vld [vmem:[#allocation5 + $0x94] sm:$0xff]
    %v114 = vld [vmem:[#allocation5 + $0x9c] sm:$0xf]
    %v115 = vld [vmem:[#allocation5 + $0xa0] sm:$0xff]
    %v116 = vld [vmem:[#allocation5 + $0xa8] sm:$0xff]
    %v117 = vld [vmem:[#allocation5 + $0xb0] sm:$0xf]
    %v118 = vld [vmem:[#allocation5 + $0xb4] sm:$0xff]
    %v119 = vld [vmem:[#allocation5 + $0xbc] sm:$0xff]
    %v120 = vld [vmem:[#allocation5 + $0xc4] sm:$0xf]
    %v121 = vld [vmem:[#allocation5 + $0xc8] sm:$0xff]
    %v122 = vld [vmem:[#allocation5 + $0xd0] sm:$0xff]
    %v123 = vld [vmem:[#allocation5 + $0xd8] sm:$0xf]
    %v124 = vld [vmem:[#allocation5 + $0xdc] sm:$0xff]
    %v125 = vld [vmem:[#allocation5 + $0xe4] sm:$0xff]
    %v126 = vld [vmem:[#allocation5 + $0xec] sm:$0xf]
    %v127 = vld [vmem:[#allocation5 + $0xf0] sm:$0xff]
    %v128 = vld [vmem:[#allocation5 + $0xf8] sm:$0xff]
    %v129 = vld [vmem:[#allocation5 + $0x100] sm:$0xf]
    %v130 = vld [vmem:[#allocation5 + $0x104] sm:$0xff]
    %v131 = vld [vmem:[#allocation5 + $0x10c] sm:$0xff]
    %v132 = vld [vmem:[#allocation5 + $0x114] sm:$0xf]
    %v133 = vld [vmem:[#allocation5 + $0x118] sm:$0xff]
    %v134 = vld [vmem:[#allocation5 + $0x120] sm:$0xff]
    %v135 = vld [vmem:[#allocation5 + $0x128] sm:$0xf]
    %v136 = vld [vmem:[#allocation5 + $0x12c] sm:$0xff]
    %v137 = vld [vmem:[#allocation5 + $0x134] sm:$0xff]
    %v138 = vld [vmem:[#allocation5 + $0x13c] sm:$0xf]
    %v147 = vunpack.c.l.b16 %v83
    %v148 = vunpack.c.l.b16 %v84
    %v149 = vunpack.c.l.b16 %v85
    %v150 = vunpack.c.l.b16 %v86
    %v151 = vunpack.c.l.b16 %v87
    %v152 = vunpack.c.l.b16 %v88
    %v153 = vunpack.c.l.b16 %v89
    %v154 = vunpack.c.l.b16 %v90
    %v155 = vpack.c.b16 %v148, %v147
    %v156 = vpack.c.b16 %v150, %v149
    %v157 = vpack.c.b16 %v152, %v151
    %v158 = vpack.c.b16 %v154, %v153
    %v211 = vunpack.c.l.b16 %v91
    %v212 = vunpack.c.h.b16 %v91
    %v213 = vunpack.c.l.b16 %v92
    %v214 = vunpack.c.h.b16 %v92
    %v215 = vunpack.c.l.b16 %v93
    %v216 = vunpack.c.l.b16 %v94
    %v217 = vunpack.c.h.b16 %v94
    %v218 = vunpack.c.l.b16 %v95
    %v219 = vunpack.c.h.b16 %v95
    %v220 = vunpack.c.l.b16 %v96
    %v221 = vunpack.c.l.b16 %v97
    %v222 = vunpack.c.h.b16 %v97
    %v223 = vunpack.c.l.b16 %v98
    %v224 = vunpack.c.h.b16 %v98
    %v225 = vunpack.c.l.b16 %v99
    %v226 = vunpack.c.l.b16 %v100
    %v227 = vunpack.c.h.b16 %v100
    %v228 = vunpack.c.l.b16 %v101
    %v229 = vunpack.c.h.b16 %v101
    %v230 = vunpack.c.l.b16 %v102
    %v231 = vunpack.c.l.b16 %v103
    %v232 = vunpack.c.h.b16 %v103
    %v233 = vunpack.c.l.b16 %v104
    %v234 = vunpack.c.h.b16 %v104
    %v235 = vunpack.c.l.b16 %v105
    %v236 = vunpack.c.l.b16 %v106
    %v237 = vunpack.c.h.b16 %v106
    %v238 = vunpack.c.l.b16 %v107
    %v239 = vunpack.c.h.b16 %v107
    %v240 = vunpack.c.l.b16 %v108
    %v241 = vunpack.c.l.b16 %v109
    %v242 = vunpack.c.h.b16 %v109
    %v243 = vunpack.c.l.b16 %v110
    %v244 = vunpack.c.h.b16 %v110
    %v245 = vunpack.c.l.b16 %v111
    %v246 = vunpack.c.l.b16 %v112
    %v247 = vunpack.c.h.b16 %v112
    %v248 = vunpack.c.l.b16 %v113
    %v249 = vunpack.c.h.b16 %v113
    %v250 = vunpack.c.l.b16 %v114
    %v251 = vunpack.c.l.b16 %v115
    %v252 = vunpack.c.h.b16 %v115
    %v253 = vunpack.c.l.b16 %v116
    %v254 = vunpack.c.h.b16 %v116
    %v255 = vunpack.c.l.b16 %v117
    %v256 = vunpack.c.l.b16 %v118
    %v257 = vunpack.c.h.b16 %v118
    %v258 = vunpack.c.l.b16 %v119
    %v259 = vunpack.c.h.b16 %v119
    %v260 = vunpack.c.l.b16 %v120
    %v261 = vunpack.c.l.b16 %v121
    %v262 = vunpack.c.h.b16 %v121
    %v263 = vunpack.c.l.b16 %v122
    %v264 = vunpack.c.h.b16 %v122
    %v265 = vunpack.c.l.b16 %v123
    %v266 = vunpack.c.l.b16 %v124
    %v267 = vunpack.c.h.b16 %v124
    %v268 = vunpack.c.l.b16 %v125
    %v269 = vunpack.c.h.b16 %v125
    %v270 = vunpack.c.l.b16 %v126
    %v271 = vunpack.c.l.b16 %v127
    %v272 = vunpack.c.h.b16 %v127
    %v273 = vunpack.c.l.b16 %v128
    %v274 = vunpack.c.h.b16 %v128
    %v275 = vunpack.c.l.b16 %v129
    %v276 = vunpack.c.l.b16 %v130
    %v277 = vunpack.c.h.b16 %v130
    %v278 = vunpack.c.l.b16 %v131
    %v279 = vunpack.c.h.b16 %v131
    %v280 = vunpack.c.l.b16 %v132
    %v281 = vunpack.c.l.b16 %v133
    %v282 = vunpack.c.h.b16 %v133
    %v283 = vunpack.c.l.b16 %v134
    %v284 = vunpack.c.h.b16 %v134
    %v285 = vunpack.c.l.b16 %v135
    %v286 = vunpack.c.l.b16 %v136
    %v287 = vunpack.c.h.b16 %v136
    %v288 = vunpack.c.l.b16 %v137
    %v289 = vunpack.c.h.b16 %v137
    %v290 = vunpack.c.l.b16 %v138
    %v291 = vpack.c.b16 %v216, %v211
    %v292 = vpack.c.b16 %v217, %v212
    %v293 = vpack.c.b16 %v218, %v213
    %v294 = vpack.c.b16 %v219, %v214
    %v295 = vpack.c.b16 %v220, %v215
    %v296 = vpack.c.b16 %v226, %v221
    %v297 = vpack.c.b16 %v227, %v222
    %v298 = vpack.c.b16 %v228, %v223
    %v299 = vpack.c.b16 %v229, %v224
    %v300 = vpack.c.b16 %v230, %v225
    %v301 = vpack.c.b16 %v236, %v231
    %v302 = vpack.c.b16 %v237, %v232
    %v303 = vpack.c.b16 %v238, %v233
    %v304 = vpack.c.b16 %v239, %v234
    %v305 = vpack.c.b16 %v240, %v235
    %v306 = vpack.c.b16 %v246, %v241
    %v307 = vpack.c.b16 %v247, %v242
    %v308 = vpack.c.b16 %v248, %v243
    %v309 = vpack.c.b16 %v249, %v244
    %v310 = vpack.c.b16 %v250, %v245
    %v311 = vpack.c.b16 %v256, %v251
    %v312 = vpack.c.b16 %v257, %v252
    %v313 = vpack.c.b16 %v258, %v253
    %v314 = vpack.c.b16 %v259, %v254
    %v315 = vpack.c.b16 %v260, %v255
    %v316 = vpack.c.b16 %v266, %v261
    %v317 = vpack.c.b16 %v267, %v262
    %v318 = vpack.c.b16 %v268, %v263
    %v319 = vpack.c.b16 %v269, %v264
    %v320 = vpack.c.b16 %v270, %v265
    %v321 = vpack.c.b16 %v276, %v271
    %v322 = vpack.c.b16 %v277, %v272
    %v323 = vpack.c.b16 %v278, %v273
    %v324 = vpack.c.b16 %v279, %v274
    %v325 = vpack.c.b16 %v280, %v275
    %v326 = vpack.c.b16 %v286, %v281
    %v327 = vpack.c.b16 %v287, %v282
    %v328 = vpack.c.b16 %v288, %v283
    %v329 = vpack.c.b16 %v289, %v284
    %v330 = vpack.c.b16 %v290, %v285
    %371 = vmatprep.subr.bf16.mxu0 %v292
    %372 = vmatpush1.bf16.msra.mxu0 %v291
    %373 = vmatprep.subr.bf16.mxu0 %v297
    %374 = vmatpush1.bf16.msra.mxu0 %v296
    %375 = vmatprep.subr.bf16.mxu0 %v302
    %376 = vmatpush1.bf16.msra.mxu0 %v301
    %377 = vmatprep.subr.bf16.mxu0 %v307
    %378 = vmatpush1.bf16.msra.mxu0 %v306
    %379 = vmatprep.subr.bf16.mxu0 %v312
    %380 = vmatpush1.bf16.msra.mxu0 %v311
    %381 = vmatprep.subr.bf16.mxu0 %v317
    %382 = vmatpush1.bf16.msra.mxu0 %v316
    %383 = vmatprep.subr.bf16.mxu0 %v322
    %384 = vmatpush1.bf16.msra.mxu0 %v321
    %385 = vmatprep.subr.bf16.mxu0 %v327
    %386 = vmatpush1.bf16.msra.mxu0 %v326
    %387 = vmatprep.subr.bf16.mxu0 0
    %388 = vmatpush1.bf16.msra.mxu0 0
    %389 = vmatprep.subr.bf16.mxu0 0
    %390 = vmatpush1.bf16.msra.mxu0 0
    %391 = vmatprep.subr.bf16.mxu0 0
    %392 = vmatpush1.bf16.msra.mxu0 0
    %393 = vmatprep.subr.bf16.mxu0 0
    %394 = vmatpush1.bf16.msra.mxu0 0
    %395 = vmatprep.subr.bf16.mxu0 0
    %396 = vmatpush1.bf16.msra.mxu0 0
    %397 = vmatprep.subr.bf16.mxu0 0
    %398 = vmatpush1.bf16.msra.mxu0 0
    %399 = vmatprep.subr.bf16.mxu0 0
    %400 = vmatpush1.bf16.msra.mxu0 0
    %401 = vmatprep.subr.bf16.mxu0 0
    %402 = vmatpush1.bf16.msra.mxu0 0
    %403 = vmatprep.mubr.bf16.mxu0 0
    %404 = vmatmul.mubr.bf16.gmra.mrb[0].mxu0 %v155
    %v405 = vpop.f32.mrb[0].mxu0
    %v406 = vadd.f32 0.0, %v405
    %v407 = vpop.f32.mrb[0].mxu0
    %v408 = vadd.f32 0.0, %v407
    %v409 = vpop.f32.mrb[0].mxu0
    %v410 = vadd.f32 0.0, %v409
    %v411 = vpop.f32.mrb[0].mxu0
    %v412 = vadd.f32 0.0, %v411
    %413 = vmatprep.mubr.bf16.mxu0 0
    %414 = vmatmul.mubr.bf16.gmra.mrb[0].mxu0 %v156
    %v415 = vpop.f32.mrb[0].mxu0
    %v416 = vadd.f32 0.0, %v415
    %v417 = vpop.f32.mrb[0].mxu0
    %v418 = vadd.f32 0.0, %v417
    %v419 = vpop.f32.mrb[0].mxu0
    %v420 = vadd.f32 0.0, %v419
    %v421 = vpop.f32.mrb[0].mxu0
    %v422 = vadd.f32 0.0, %v421
    %423 = vmatprep.mubr.bf16.mxu0 0
    %424 = vmatmul.mubr.bf16.gmra.mrb[0].mxu0 %v157
    %v425 = vpop.f32.mrb[0].mxu0
    %v426 = vadd.f32 0.0, %v425
    %v427 = vpop.f32.mrb[0].mxu0
    %v428 = vadd.f32 0.0, %v427
    %v429 = vpop.f32.mrb[0].mxu0
    %v430 = vadd.f32 0.0, %v429
    %v431 = vpop.f32.mrb[0].mxu0
    %v432 = vadd.f32 0.0, %v431
    %433 = vmatprep.mubr.bf16.mxu0 0
    %434 = vmatmul.mubr.bf16.gmra.mrb[0].mxu0 %v158
    %v435 = vpop.f32.mrb[0].mxu0
    %v436 = vadd.f32 0.0, %v435
    %v437 = vpop.f32.mrb[0].mxu0
    %v438 = vadd.f32 0.0, %v437
    %v439 = vpop.f32.mrb[0].mxu0
    %v440 = vadd.f32 0.0, %v439
    %v441 = vpop.f32.mrb[0].mxu0
    %v442 = vadd.f32 0.0, %v441
    %443 = vdwg.mxu0
    %444 = vmatprep.subr.bf16.mxu0 %v294
    %445 = vmatpush1.bf16.msra.mxu0 %v293
    %446 = vmatprep.subr.bf16.mxu0 %v299
    %447 = vmatpush1.bf16.msra.mxu0 %v298
    %448 = vmatprep.subr.bf16.mxu0 %v304
    %449 = vmatpush1.bf16.msra.mxu0 %v303
    %450 = vmatprep.subr.bf16.mxu0 %v309
    %451 = vmatpush1.bf16.msra.mxu0 %v308
    %452 = vmatprep.subr.bf16.mxu0 %v314
    %453 = vmatpush1.bf16.msra.mxu0 %v313
    %454 = vmatprep.subr.bf16.mxu0 %v319
    %455 = vmatpush1.bf16.msra.mxu0 %v318
    %456 = vmatprep.subr.bf16.mxu0 %v324
    %457 = vmatpush1.bf16.msra.mxu0 %v323
    %458 = vmatprep.subr.bf16.mxu0 %v329
    %459 = vmatpush1.bf16.msra.mxu0 %v328
    %460 = vmatprep.subr.bf16.mxu0 0
    %461 = vmatpush1.bf16.msra.mxu0 0
    %462 = vmatprep.subr.bf16.mxu0 0
    %463 = vmatpush1.bf16.msra.mxu0 0
    %464 = vmatprep.subr.bf16.mxu0 0
    %465 = vmatpush1.bf16.msra.mxu0 0
    %466 = vmatprep.subr.bf16.mxu0 0
    %467 = vmatpush1.bf16.msra.mxu0 0
    %468 = vmatprep.subr.bf16.mxu0 0
    %469 = vmatpush1.bf16.msra.mxu0 0
    %470 = vmatprep.subr.bf16.mxu0 0
    %471 = vmatpush1.bf16.msra.mxu0 0
    %472 = vmatprep.subr.bf16.mxu0 0
    %473 = vmatpush1.bf16.msra.mxu0 0
    %474 = vmatprep.subr.bf16.mxu0 0
    %475 = vmatpush1.bf16.msra.mxu0 0
    %476 = vmatprep.mubr.bf16.mxu0 0
    %477 = vmatmul.mubr.bf16.gmra.mrb[0].mxu0 %v155
    %v478 = vpop.f32.mrb[0].mxu0
    %v479 = vadd.f32 0.0, %v478
    %v480 = vpop.f32.mrb[0].mxu0
    %v481 = vadd.f32 0.0, %v480
    %v482 = vpop.f32.mrb[0].mxu0
    %v483 = vadd.f32 0.0, %v482
    %v484 = vpop.f32.mrb[0].mxu0
    %v485 = vadd.f32 0.0, %v484
    %486 = vmatprep.mubr.bf16.mxu0 0
    %487 = vmatmul.mubr.bf16.gmra.mrb[0].mxu0 %v156
    %v488 = vpop.f32.mrb[0].mxu0
    %v489 = vadd.f32 0.0, %v488
    %v490 = vpop.f32.mrb[0].mxu0
    %v491 = vadd.f32 0.0, %v490
    %v492 = vpop.f32.mrb[0].mxu0
    %v493 = vadd.f32 0.0, %v492
    %v494 = vpop.f32.mrb[0].mxu0
    %v495 = vadd.f32 0.0, %v494
    %496 = vmatprep.mubr.bf16.mxu0 0
    %497 = vmatmul.mubr.bf16.gmra.mrb[0].mxu0 %v157
    %v498 = vpop.f32.mrb[0].mxu0
    %v499 = vadd.f32 0.0, %v498
    %v500 = vpop.f32.mrb[0].mxu0
    %v501 = vadd.f32 0.0, %v500
    %v502 = vpop.f32.mrb[0].mxu0
    %v503 = vadd.f32 0.0, %v502
    %v504 = vpop.f32.mrb[0].mxu0
    %v505 = vadd.f32 0.0, %v504
    %506 = vmatprep.mubr.bf16.mxu0 0
    %507 = vmatmul.mubr.bf16.gmra.mrb[0].mxu0 %v158
    %v508 = vpop.f32.mrb[0].mxu0
    %v509 = vadd.f32 0.0, %v508
    %v510 = vpop.f32.mrb[0].mxu0
    %v511 = vadd.f32 0.0, %v510
    %v512 = vpop.f32.mrb[0].mxu0
    %v513 = vadd.f32 0.0, %v512
    %v514 = vpop.f32.mrb[0].mxu0
    %v515 = vadd.f32 0.0, %v514
    %516 = vdwg.mxu0
    %517 = vmatprep.subr.bf16.mxu0 0
    %518 = vmatpush1.bf16.msra.mxu0 %v295
    %519 = vmatprep.subr.bf16.mxu0 0
    %520 = vmatpush1.bf16.msra.mxu0 %v300
    %521 = vmatprep.subr.bf16.mxu0 0
    %522 = vmatpush1.bf16.msra.mxu0 %v305
    %523 = vmatprep.subr.bf16.mxu0 0
    %524 = vmatpush1.bf16.msra.mxu0 %v310
    %525 = vmatprep.subr.bf16.mxu0 0
    %526 = vmatpush1.bf16.msra.mxu0 %v315
    %527 = vmatprep.subr.bf16.mxu0 0
    %528 = vmatpush1.bf16.msra.mxu0 %v320
    %529 = vmatprep.subr.bf16.mxu0 0
    %530 = vmatpush1.bf16.msra.mxu0 %v325
    %531 = vmatprep.subr.bf16.mxu0 0
    %532 = vmatpush1.bf16.msra.mxu0 %v330
    %533 = vmatprep.subr.bf16.mxu0 0
    %534 = vmatpush1.bf16.msra.mxu0 0
    %535 = vmatprep.subr.bf16.mxu0 0
    %536 = vmatpush1.bf16.msra.mxu0 0
    %537 = vmatprep.subr.bf16.mxu0 0
    %538 = vmatpush1.bf16.msra.mxu0 0
    %539 = vmatprep.subr.bf16.mxu0 0
    %540 = vmatpush1.bf16.msra.mxu0 0
    %541 = vmatprep.subr.bf16.mxu0 0
    %542 = vmatpush1.bf16.msra.mxu0 0
    %543 = vmatprep.subr.bf16.mxu0 0
    %544 = vmatpush1.bf16.msra.mxu0 0
    %545 = vmatprep.subr.bf16.mxu0 0
    %546 = vmatpush1.bf16.msra.mxu0 0
    %547 = vmatprep.subr.bf16.mxu0 0
    %548 = vmatpush1.bf16.msra.mxu0 0
    %549 = vmatprep.mubr.bf16.mxu0 0
    %550 = vmatmul.mubr.bf16.gmra.mrb[0].mxu0 %v155
    %v551 = vpop.f32.mrb[0].mxu0
    %v552 = vadd.f32 0.0, %v551
    %v553 = vpop.f32.mrb[0].mxu0
    %v554 = vpop.f32.mrb[0].mxu0
    %v555 = vadd.f32 0.0, %v554
    %v556 = vpop.f32.mrb[0].mxu0
    %557 = vmatprep.mubr.bf16.mxu0 0
    %558 = vmatmul.mubr.bf16.gmra.mrb[0].mxu0 %v156
    %v559 = vpop.f32.mrb[0].mxu0
    %v560 = vadd.f32 0.0, %v559
    %v561 = vpop.f32.mrb[0].mxu0
    %v562 = vpop.f32.mrb[0].mxu0
    %v563 = vadd.f32 0.0, %v562
    %v564 = vpop.f32.mrb[0].mxu0
    %565 = vmatprep.mubr.bf16.mxu0 0
    %566 = vmatmul.mubr.bf16.gmra.mrb[0].mxu0 %v157
    %v567 = vpop.f32.mrb[0].mxu0
    %v568 = vadd.f32 0.0, %v567
    %v569 = vpop.f32.mrb[0].mxu0
    %v570 = vpop.f32.mrb[0].mxu0
    %v571 = vadd.f32 0.0, %v570
    %v572 = vpop.f32.mrb[0].mxu0
    %573 = vmatprep.mubr.bf16.mxu0 0
    %574 = vmatmul.mubr.bf16.gmra.mrb[0].mxu0 %v158
    %v575 = vpop.f32.mrb[0].mxu0
    %v576 = vadd.f32 0.0, %v575
    %v577 = vpop.f32.mrb[0].mxu0
    %v578 = vpop.f32.mrb[0].mxu0
    %v579 = vadd.f32 0.0, %v578
    %v580 = vpop.f32.mrb[0].mxu0
    %581 = vdwg.mxu0
    %v590 = vrot.slane %v408, 1
    %v591 = vrot.slane %v412, 1
    %v592 = vrot.slane %v418, 1
    %v593 = vrot.slane %v422, 1
    %v594 = vrot.slane %v428, 1
    %v595 = vrot.slane %v432, 1
    %v596 = vrot.slane %v438, 1
    %v597 = vrot.slane %v442, 1
    %v606 = vadd.f32 %v406, %v590
    %v607 = vadd.f32 %v410, %v591
    %v608 = vadd.f32 %v416, %v592
    %v609 = vadd.f32 %v420, %v593
    %v610 = vadd.f32 %v426, %v594
    %v611 = vadd.f32 %v430, %v595
    %v612 = vadd.f32 %v436, %v596
    %v613 = vadd.f32 %v440, %v597
    %vm614 = vcmask 1046528
    %v615 = vsel %vm614, %v606, -inf
    %v616 = vrot.slane %v615, 4
    %v617 = vmax.f32 %v615, %v616
    %v618 = vrot.slane %v617, 2
    %v619 = vmax.f32 %v617, %v618
    %v620 = vrot.slane %v619, 1
    %v621 = vmax.f32 %v619, %v620
    %v622 = vsel %vm614, %v607, -inf
    %v623 = vrot.slane %v622, 4
    %v624 = vmax.f32 %v622, %v623
    %v625 = vrot.slane %v624, 2
    %v626 = vmax.f32 %v624, %v625
    %v627 = vrot.slane %v626, 1
    %v628 = vmax.f32 %v626, %v627
    %v629 = vsel %vm614, %v608, -inf
    %v630 = vrot.slane %v629, 4
    %v631 = vmax.f32 %v629, %v630
    %v632 = vrot.slane %v631, 2
    %v633 = vmax.f32 %v631, %v632
    %v634 = vrot.slane %v633, 1
    %v635 = vmax.f32 %v633, %v634
    %v636 = vsel %vm614, %v609, -inf
    %v637 = vrot.slane %v636, 4
    %v638 = vmax.f32 %v636, %v637
    %v639 = vrot.slane %v638, 2
    %v640 = vmax.f32 %v638, %v639
    %v641 = vrot.slane %v640, 1
    %v642 = vmax.f32 %v640, %v641
    %v643 = vsel %vm614, %v610, -inf
    %v644 = vrot.slane %v643, 4
    %v645 = vmax.f32 %v643, %v644
    %v646 = vrot.slane %v645, 2
    %v647 = vmax.f32 %v645, %v646
    %v648 = vrot.slane %v647, 1
    %v649 = vmax.f32 %v647, %v648
    %v650 = vsel %vm614, %v611, -inf
    %v651 = vrot.slane %v650, 4
    %v652 = vmax.f32 %v650, %v651
    %v653 = vrot.slane %v652, 2
    %v654 = vmax.f32 %v652, %v653
    %v655 = vrot.slane %v654, 1
    %v656 = vmax.f32 %v654, %v655
    %v657 = vsel %vm614, %v612, -inf
    %v658 = vrot.slane %v657, 4
    %v659 = vmax.f32 %v657, %v658
    %v660 = vrot.slane %v659, 2
    %v661 = vmax.f32 %v659, %v660
    %v662 = vrot.slane %v661, 1
    %v663 = vmax.f32 %v661, %v662
    %v664 = vsel %vm614, %v613, -inf
    %v665 = vrot.slane %v664, 4
    %v666 = vmax.f32 %v664, %v665
    %v667 = vrot.slane %v666, 2
    %v668 = vmax.f32 %v666, %v667
    %v669 = vrot.slane %v668, 1
    %v670 = vmax.f32 %v668, %v669
    %v679 = vrot.slane %v481, 1
    %v680 = vrot.slane %v485, 1
    %v681 = vrot.slane %v491, 1
    %v682 = vrot.slane %v495, 1
    %v683 = vrot.slane %v501, 1
    %v684 = vrot.slane %v505, 1
    %v685 = vrot.slane %v511, 1
    %v686 = vrot.slane %v515, 1
    %v695 = vadd.f32 %v479, %v679
    %v696 = vadd.f32 %v483, %v680
    %v697 = vadd.f32 %v489, %v681
    %v698 = vadd.f32 %v493, %v682
    %v699 = vadd.f32 %v499, %v683
    %v700 = vadd.f32 %v503, %v684
    %v701 = vadd.f32 %v509, %v685
    %v702 = vadd.f32 %v513, %v686
    %v711 = vrot.slane %v552, 2
    %v712 = vrot.slane %v555, 2
    %v713 = vrot.slane %v560, 2
    %v714 = vrot.slane %v563, 2
    %v715 = vrot.slane %v568, 2
    %v716 = vrot.slane %v571, 2
    %v717 = vrot.slane %v576, 2
    %v718 = vrot.slane %v579, 2
    %v727 = vadd.f32 %v695, %v711
    %v728 = vadd.f32 %v696, %v712
    %v729 = vadd.f32 %v697, %v713
    %v730 = vadd.f32 %v698, %v714
    %v731 = vadd.f32 %v699, %v715
    %v732 = vadd.f32 %v700, %v716
    %v733 = vadd.f32 %v701, %v717
    %v734 = vadd.f32 %v702, %v718
    %vm735 = vcmask 1045504
    %v736 = vsel %vm735, %v727, -inf
    %v737 = vrot.slane %v736, 4
    %v738 = vmax.f32 %v736, %v737
    %v739 = vrot.slane %v738, 2
    %v740 = vmax.f32 %v738, %v739
    %v741 = vrot.slane %v740, 1
    %v742 = vmax.f32 %v740, %v741
    %v743 = vsel %vm735, %v728, -inf
    %v744 = vrot.slane %v743, 4
    %v745 = vmax.f32 %v743, %v744
    %v746 = vrot.slane %v745, 2
    %v747 = vmax.f32 %v745, %v746
    %v748 = vrot.slane %v747, 1
    %v749 = vmax.f32 %v747, %v748
    %v750 = vsel %vm735, %v729, -inf
    %v751 = vrot.slane %v750, 4
    %v752 = vmax.f32 %v750, %v751
    %v753 = vrot.slane %v752, 2
    %v754 = vmax.f32 %v752, %v753
    %v755 = vrot.slane %v754, 1
    %v756 = vmax.f32 %v754, %v755
    %v757 = vsel %vm735, %v730, -inf
    %v758 = vrot.slane %v757, 4
    %v759 = vmax.f32 %v757, %v758
    %v760 = vrot.slane %v759, 2
    %v761 = vmax.f32 %v759, %v760
    %v762 = vrot.slane %v761, 1
    %v763 = vmax.f32 %v761, %v762
    %v764 = vsel %vm735, %v731, -inf
    %v765 = vrot.slane %v764, 4
    %v766 = vmax.f32 %v764, %v765
    %v767 = vrot.slane %v766, 2
    %v768 = vmax.f32 %v766, %v767
    %v769 = vrot.slane %v768, 1
    %v770 = vmax.f32 %v768, %v769
    %v771 = vsel %vm735, %v732, -inf
    %v772 = vrot.slane %v771, 4
    %v773 = vmax.f32 %v771, %v772
    %v774 = vrot.slane %v773, 2
    %v775 = vmax.f32 %v773, %v774
    %v776 = vrot.slane %v775, 1
    %v777 = vmax.f32 %v775, %v776
    %v778 = vsel %vm735, %v733, -inf
    %v779 = vrot.slane %v778, 4
    %v780 = vmax.f32 %v778, %v779
    %v781 = vrot.slane %v780, 2
    %v782 = vmax.f32 %v780, %v781
    %v783 = vrot.slane %v782, 1
    %v784 = vmax.f32 %v782, %v783
    %v785 = vsel %vm735, %v734, -inf
    %v786 = vrot.slane %v785, 4
    %v787 = vmax.f32 %v785, %v786
    %v788 = vrot.slane %v787, 2
    %v789 = vmax.f32 %v787, %v788
    %v790 = vrot.slane %v789, 1
    %v791 = vmax.f32 %v789, %v790
    %vm800 = vcmask 1041409
    %v801 = vsel %vm800, %v628, %v621
    %vm802 = vcmask 1042434
    %v803 = vsel %vm802, %v635, %v801
    %vm804 = vcmask 1043459
    %v805 = vsel %vm804, %v642, %v803
    %vm806 = vcmask 1044484
    %v807 = vsel %vm806, %v649, %v805
    %vm808 = vcmask 1045509
    %v809 = vsel %vm808, %v656, %v807
    %vm810 = vcmask 1046534
    %v811 = vsel %vm810, %v663, %v809
    %vm812 = vcmask 1047559
    %v813 = vsel %vm812, %v670, %v811
    %v823 = vsel %vm800, %v749, %v742
    %v824 = vsel %vm802, %v756, %v823
    %v825 = vsel %vm804, %v763, %v824
    %v826 = vsel %vm806, %v770, %v825
    %v827 = vsel %vm808, %v777, %v826
    %v828 = vsel %vm810, %v784, %v827
    %v829 = vsel %vm812, %v791, %v828
    %v831 = vld [vmem:[%s2] sm:$0x3]
    %v833 = vlaneseq
    %v834 = vshrl.u32 %v833, 7
    %v835 = vsub.s32 0, %v834
    %v836 = vrot.slane %v831, %v835
    %v837 = vlaneseq
    %v838 = vshrl.u32 %v837, 7
    %v839 = vsub.s32 1, %v838
    %v840 = vrot.slane %v831, %v839
    %v843 = vadd.f32 %v813, %v836
    %v844 = vadd.f32 %v829, %v840
    %v845 = vmax.f32 %v843, 0.0
    %v846 = vmax.f32 %v844, 0.0
    %v847 = vpack.c.bf16 %v845, %v845
    %v848 = vpack.c.bf16 %v846, %v846
    %v849 = vld [vmem:[#allocation7] sm:$0xff]
    %v850 = vld [vmem:[#allocation7 + $0x8] sm:$0xff]
    %v851 = vld [vmem:[#allocation7 + $0x10] sm:$0xff]
    %v852 = vld [vmem:[#allocation7 + $0x18] sm:$0xff]
    %v853 = vld [vmem:[#allocation7 + $0x20] sm:$0xff]
    %v854 = vld [vmem:[#allocation7 + $0x28] sm:$0xff]
    %v855 = vld [vmem:[#allocation7 + $0x30] sm:$0xff]
    %v856 = vld [vmem:[#allocation7 + $0x38] sm:$0xff]
    %v857 = vld [vmem:[#allocation7 + $0x40] sm:$0xff]
    %v858 = vld [vmem:[#allocation7 + $0x48] sm:$0xff]
    %v859 = vld [vmem:[#allocation7 + $0x50] sm:$0xff]
    %v860 = vld [vmem:[#allocation7 + $0x58] sm:$0xff]
    %v861 = vld [vmem:[#allocation7 + $0x60] sm:$0xff]
    %v862 = vld [vmem:[#allocation7 + $0x68] sm:$0xff]
    %v863 = vld [vmem:[#allocation7 + $0x70] sm:$0xff]
    %v864 = vld [vmem:[#allocation7 + $0x78] sm:$0xff]
    %v865 = vld [vmem:[#allocation7 + $0x80] sm:$0xff]
    %v866 = vld [vmem:[#allocation7 + $0x88] sm:$0xff]
    %v867 = vld [vmem:[#allocation7 + $0x90] sm:$0xff]
    %v868 = vld [vmem:[#allocation7 + $0x98] sm:$0xff]
    %v869 = vld [vmem:[#allocation7 + $0xa0] sm:$0xff]
    %v870 = vld [vmem:[#allocation7 + $0xa8] sm:$0xff]
    %v871 = vld [vmem:[#allocation7 + $0xb0] sm:$0xff]
    %v872 = vld [vmem:[#allocation7 + $0xb8] sm:$0xff]
    %v873 = vld [vmem:[#allocation7 + $0xc0] sm:$0xff]
    %v874 = vld [vmem:[#allocation7 + $0xc8] sm:$0xff]
    %v875 = vld [vmem:[#allocation7 + $0xd0] sm:$0xff]
    %v876 = vld [vmem:[#allocation7 + $0xd8] sm:$0xff]
    %v877 = vld [vmem:[#allocation7 + $0xe0] sm:$0xff]
    %v878 = vld [vmem:[#allocation7 + $0xe8] sm:$0xff]
    %v879 = vld [vmem:[#allocation7 + $0xf0] sm:$0xff]
    %v880 = vld [vmem:[#allocation7 + $0xf8] sm:$0xff]
    %v881 = vld [vmem:[%s4] sm:$0x3]
    %v883 = vlaneseq
    %v884 = vshrl.u32 %v883, 7
    %v885 = vsub.s32 0, %v884
    %v886 = vrot.slane %v881, %v885
    %v887 = vlaneseq
    %v888 = vshrl.u32 %v887, 7
    %v889 = vsub.s32 1, %v888
    %v890 = vrot.slane %v881, %v889
    %v925 = vunpack.c.l.b16 %v849
    %v926 = vunpack.c.h.b16 %v849
    %v927 = vunpack.c.l.b16 %v850
    %v928 = vunpack.c.h.b16 %v850
    %v929 = vunpack.c.l.b16 %v851
    %v930 = vunpack.c.h.b16 %v851
    %v931 = vunpack.c.l.b16 %v852
    %v932 = vunpack.c.h.b16 %v852
    %v933 = vunpack.c.l.b16 %v853
    %v934 = vunpack.c.h.b16 %v853
    %v935 = vunpack.c.l.b16 %v854
    %v936 = vunpack.c.h.b16 %v854
    %v937 = vunpack.c.l.b16 %v855
    %v938 = vunpack.c.h.b16 %v855
    %v939 = vunpack.c.l.b16 %v856
    %v940 = vunpack.c.h.b16 %v856
    %v941 = vunpack.c.l.b16 %v857
    %v942 = vunpack.c.h.b16 %v857
    %v943 = vunpack.c.l.b16 %v858
    %v944 = vunpack.c.h.b16 %v858
    %v945 = vunpack.c.l.b16 %v859
    %v946 = vunpack.c.h.b16 %v859
    %v947 = vunpack.c.l.b16 %v860
    %v948 = vunpack.c.h.b16 %v860
    %v949 = vunpack.c.l.b16 %v861
    %v950 = vunpack.c.h.b16 %v861
    %v951 = vunpack.c.l.b16 %v862
    %v952 = vunpack.c.h.b16 %v862
    %v953 = vunpack.c.l.b16 %v863
    %v954 = vunpack.c.h.b16 %v863
    %v955 = vunpack.c.l.b16 %v864
    %v956 = vunpack.c.h.b16 %v864
    %v957 = vunpack.c.l.b16 %v865
    %v958 = vunpack.c.h.b16 %v865
    %v959 = vunpack.c.l.b16 %v866
    %v960 = vunpack.c.h.b16 %v866
    %v961 = vunpack.c.l.b16 %v867
    %v962 = vunpack.c.h.b16 %v867
    %v963 = vunpack.c.l.b16 %v868
    %v964 = vunpack.c.h.b16 %v868
    %v965 = vunpack.c.l.b16 %v869
    %v966 = vunpack.c.h.b16 %v869
    %v967 = vunpack.c.l.b16 %v870
    %v968 = vunpack.c.h.b16 %v870
    %v969 = vunpack.c.l.b16 %v871
    %v970 = vunpack.c.h.b16 %v871
    %v971 = vunpack.c.l.b16 %v872
    %v972 = vunpack.c.h.b16 %v872
    %v973 = vunpack.c.l.b16 %v873
    %v974 = vunpack.c.h.b16 %v873
    %v975 = vunpack.c.l.b16 %v874
    %v976 = vunpack.c.h.b16 %v874
    %v977 = vunpack.c.l.b16 %v875
    %v978 = vunpack.c.h.b16 %v875
    %v979 = vunpack.c.l.b16 %v876
    %v980 = vunpack.c.h.b16 %v876
    %v981 = vunpack.c.l.b16 %v877
    %v982 = vunpack.c.h.b16 %v877
    %v983 = vunpack.c.l.b16 %v878
    %v984 = vunpack.c.h.b16 %v878
    %v985 = vunpack.c.l.b16 %v879
    %v986 = vunpack.c.h.b16 %v879
    %v987 = vunpack.c.l.b16 %v880
    %v988 = vunpack.c.h.b16 %v880
    %v989 = vpack.c.b16 %v927, %v925
    %v990 = vpack.c.b16 %v928, %v926
    %v991 = vpack.c.b16 %v931, %v929
    %v992 = vpack.c.b16 %v932, %v930
    %v993 = vpack.c.b16 %v935, %v933
    %v994 = vpack.c.b16 %v936, %v934
    %v995 = vpack.c.b16 %v939, %v937
    %v996 = vpack.c.b16 %v940, %v938
    %v997 = vpack.c.b16 %v943, %v941
    %v998 = vpack.c.b16 %v944, %v942
    %v999 = vpack.c.b16 %v947, %v945
    %v1000 = vpack.c.b16 %v948, %v946
    %v1001 = vpack.c.b16 %v951, %v949
    %v1002 = vpack.c.b16 %v952, %v950
    %v1003 = vpack.c.b16 %v955, %v953
    %v1004 = vpack.c.b16 %v956, %v954
    %v1005 = vpack.c.b16 %v959, %v957
    %v1006 = vpack.c.b16 %v960, %v958
    %v1007 = vpack.c.b16 %v963, %v961
    %v1008 = vpack.c.b16 %v964, %v962
    %v1009 = vpack.c.b16 %v967, %v965
    %v1010 = vpack.c.b16 %v968, %v966
    %v1011 = vpack.c.b16 %v971, %v969
    %v1012 = vpack.c.b16 %v972, %v970
    %v1013 = vpack.c.b16 %v975, %v973
    %v1014 = vpack.c.b16 %v976, %v974
    %v1015 = vpack.c.b16 %v979, %v977
    %v1016 = vpack.c.b16 %v980, %v978
    %v1017 = vpack.c.b16 %v983, %v981
    %v1018 = vpack.c.b16 %v984, %v982
    %v1019 = vpack.c.b16 %v987, %v985
    %v1020 = vpack.c.b16 %v988, %v986
    %1053 = vmatprep.subr.bf16.mxu0 %v990
    %1054 = vmatpush1.bf16.msra.mxu0 %v989
    %1055 = vmatprep.subr.bf16.mxu0 %v992
    %1056 = vmatpush1.bf16.msra.mxu0 %v991
    %1057 = vmatprep.subr.bf16.mxu0 %v994
    %1058 = vmatpush1.bf16.msra.mxu0 %v993
    %1059 = vmatprep.subr.bf16.mxu0 %v996
    %1060 = vmatpush1.bf16.msra.mxu0 %v995
    %1061 = vmatprep.subr.bf16.mxu0 %v998
    %1062 = vmatpush1.bf16.msra.mxu0 %v997
    %1063 = vmatprep.subr.bf16.mxu0 %v1000
    %1064 = vmatpush1.bf16.msra.mxu0 %v999
    %1065 = vmatprep.subr.bf16.mxu0 %v1002
    %1066 = vmatpush1.bf16.msra.mxu0 %v1001
    %1067 = vmatprep.subr.bf16.mxu0 %v1004
    %1068 = vmatpush1.bf16.msra.mxu0 %v1003
    %1069 = vmatprep.subr.bf16.mxu0 %v1006
    %1070 = vmatpush1.bf16.msra.mxu0 %v1005
    %1071 = vmatprep.subr.bf16.mxu0 %v1008
    %1072 = vmatpush1.bf16.msra.mxu0 %v1007
    %1073 = vmatprep.subr.bf16.mxu0 %v1010
    %1074 = vmatpush1.bf16.msra.mxu0 %v1009
    %1075 = vmatprep.subr.bf16.mxu0 %v1012
    %1076 = vmatpush1.bf16.msra.mxu0 %v1011
    %1077 = vmatprep.subr.bf16.mxu0 %v1014
    %1078 = vmatpush1.bf16.msra.mxu0 %v1013
    %1079 = vmatprep.subr.bf16.mxu0 %v1016
    %1080 = vmatpush1.bf16.msra.mxu0 %v1015
    %1081 = vmatprep.subr.bf16.mxu0 %v1018
    %1082 = vmatpush1.bf16.msra.mxu0 %v1017
    %1083 = vmatprep.subr.bf16.mxu0 %v1020
    %1084 = vmatpush1.bf16.msra.mxu0 %v1019
    %1085 = vmatprep.mubr.bf16.mxu0 %v848
    %1086 = vmatmul.mubr.bf16.gmra.mrb[0].mxu0 %v847
    %v1087 = vpop.f32.mrb[0].mxu0
    %v1088 = vadd.f32 %v886, %v1087
    %v1089 = vpop.f32.mrb[0].mxu0
    %v1090 = vadd.f32 %v890, %v1089
    %v1091 = vpop.f32.mrb[0].mxu0
    %v1092 = vpop.f32.mrb[0].mxu0
    %1093 = vdwg.mxu0
    %v1094 = vxor.u32 %v1088, 2147483648
    %v1095 = vxor.u32 %v1090, 2147483648
    %v1096 = vmul.f32 %v1094, 1.442695
    %v1097 = vpow.pop %v1096
    %v1098 = vmul.f32 %v1095, 1.442695
    %v1099 = vpow.pop %v1098
    %v1100 = vadd.f32 %v1097, 1.0
    %v1101 = vadd.f32 %v1099, 1.0
    %v1102 = vrcp.pop %v1100
    %v1103 = vmul.f32 1.0, %v1102
    %v1104 = vrcp.pop %v1101
    %v1105 = vmul.f32 1.0, %v1104
    %v1106 = vmax.f32 %v1088, 0.0
    %v1107 = vmax.f32 %v1090, 0.0
    %v1108 = vmul.f32 %v1103, %v1106
    %v1109 = vmul.f32 %v1105, %v1107
    %v1110 = vsub.f32 1.0, %v1103
    %v1111 = vsub.f32 1.0, %v1105
    %v1112 = vmul.f32 %v1110, %v845
    %v1113 = vmul.f32 %v1111, %v846
    %v1114 = vadd.f32 %v1108, %v1112
    %v1115 = vadd.f32 %v1109, %v1113
    %v1116 = vpack.c.bf16 %v1114, %v1114
    %v1117 = vpack.c.bf16 %v1115, %v1115
    %v1118 = vld [vmem:[#allocation8] sm:$0xf]
    %v1119 = vld [vmem:[#allocation8 + $0x4] sm:$0xf]
    %v1120 = vld [vmem:[#allocation8 + $0x8] sm:$0xf]
    %v1121 = vld [vmem:[#allocation8 + $0xc] sm:$0xf]
    %v1122 = vld [vmem:[#allocation8 + $0x10] sm:$0xf]
    %v1123 = vld [vmem:[#allocation8 + $0x14] sm:$0xf]
    %v1124 = vld [vmem:[#allocation8 + $0x18] sm:$0xf]
    %v1125 = vld [vmem:[#allocation8 + $0x1c] sm:$0xf]
    %v1126 = vld [vmem:[#allocation8 + $0x20] sm:$0xf]
    %v1127 = vld [vmem:[#allocation8 + $0x24] sm:$0xf]
    %v1128 = vld [vmem:[#allocation8 + $0x28] sm:$0xf]
    %v1129 = vld [vmem:[#allocation8 + $0x2c] sm:$0xf]
    %v1130 = vld [vmem:[#allocation8 + $0x30] sm:$0xf]
    %v1131 = vld [vmem:[#allocation8 + $0x34] sm:$0xf]
    %v1132 = vld [vmem:[#allocation8 + $0x38] sm:$0xf]
    %v1133 = vld [vmem:[#allocation8 + $0x3c] sm:$0xf]
    %v1134 = vld [vmem:[#allocation8 + $0x40] sm:$0xf]
    %v1135 = vld [vmem:[#allocation8 + $0x44] sm:$0xf]
    %v1136 = vld [vmem:[#allocation8 + $0x48] sm:$0xf]
    %v1137 = vld [vmem:[#allocation8 + $0x4c] sm:$0xf]
    %v1138 = vld [vmem:[#allocation8 + $0x50] sm:$0xf]
    %v1139 = vld [vmem:[#allocation8 + $0x54] sm:$0xf]
    %v1140 = vld [vmem:[#allocation8 + $0x58] sm:$0xf]
    %v1141 = vld [vmem:[#allocation8 + $0x5c] sm:$0xf]
    %v1142 = vld [vmem:[#allocation8 + $0x60] sm:$0xf]
    %v1143 = vld [vmem:[#allocation8 + $0x64] sm:$0xf]
    %v1144 = vld [vmem:[#allocation8 + $0x68] sm:$0xf]
    %v1145 = vld [vmem:[#allocation8 + $0x6c] sm:$0xf]
    %v1146 = vld [vmem:[#allocation8 + $0x70] sm:$0xf]
    %v1147 = vld [vmem:[#allocation8 + $0x74] sm:$0xf]
    %v1148 = vld [vmem:[#allocation8 + $0x78] sm:$0xf]
    %v1149 = vld [vmem:[#allocation8 + $0x7c] sm:$0xf]
    %v1150 = vld [vmem:[%s6] sm:$0x1]
    %v1152 = vlaneseq
    %v1153 = vshrl.u32 %v1152, 7
    %v1154 = vsub.s32 0, %v1153
    %v1155 = vrot.slane %v1150, %v1154
    %v1189 = vunpack.c.l.b16 %v1118
    %v1190 = vunpack.c.l.b16 %v1119
    %v1191 = vunpack.c.l.b16 %v1120
    %v1192 = vunpack.c.l.b16 %v1121
    %v1193 = vunpack.c.l.b16 %v1122
    %v1194 = vunpack.c.l.b16 %v1123
    %v1195 = vunpack.c.l.b16 %v1124
    %v1196 = vunpack.c.l.b16 %v1125
    %v1197 = vunpack.c.l.b16 %v1126
    %v1198 = vunpack.c.l.b16 %v1127
    %v1199 = vunpack.c.l.b16 %v1128
    %v1200 = vunpack.c.l.b16 %v1129
    %v1201 = vunpack.c.l.b16 %v1130
    %v1202 = vunpack.c.l.b16 %v1131
    %v1203 = vunpack.c.l.b16 %v1132
    %v1204 = vunpack.c.l.b16 %v1133
    %v1205 = vunpack.c.l.b16 %v1134
    %v1206 = vunpack.c.l.b16 %v1135
    %v1207 = vunpack.c.l.b16 %v1136
    %v1208 = vunpack.c.l.b16 %v1137
    %v1209 = vunpack.c.l.b16 %v1138
    %v1210 = vunpack.c.l.b16 %v1139
    %v1211 = vunpack.c.l.b16 %v1140
    %v1212 = vunpack.c.l.b16 %v1141
    %v1213 = vunpack.c.l.b16 %v1142
    %v1214 = vunpack.c.l.b16 %v1143
    %v1215 = vunpack.c.l.b16 %v1144
    %v1216 = vunpack.c.l.b16 %v1145
    %v1217 = vunpack.c.l.b16 %v1146
    %v1218 = vunpack.c.l.b16 %v1147
    %v1219 = vunpack.c.l.b16 %v1148
    %v1220 = vunpack.c.l.b16 %v1149
    %v1221 = vpack.c.b16 %v1190, %v1189
    %v1222 = vpack.c.b16 %v1192, %v1191
    %v1223 = vpack.c.b16 %v1194, %v1193
    %v1224 = vpack.c.b16 %v1196, %v1195
    %v1225 = vpack.c.b16 %v1198, %v1197
    %v1226 = vpack.c.b16 %v1200, %v1199
    %v1227 = vpack.c.b16 %v1202, %v1201
    %v1228 = vpack.c.b16 %v1204, %v1203
    %v1229 = vpack.c.b16 %v1206, %v1205
    %v1230 = vpack.c.b16 %v1208, %v1207
    %v1231 = vpack.c.b16 %v1210, %v1209
    %v1232 = vpack.c.b16 %v1212, %v1211
    %v1233 = vpack.c.b16 %v1214, %v1213
    %v1234 = vpack.c.b16 %v1216, %v1215
    %v1235 = vpack.c.b16 %v1218, %v1217
    %v1236 = vpack.c.b16 %v1220, %v1219
    %1253 = vmatprep.subr.bf16.mxu0 0
    %1254 = vmatpush1.bf16.msra.mxu0 %v1221
    %1255 = vmatprep.subr.bf16.mxu0 0
    %1256 = vmatpush1.bf16.msra.mxu0 %v1222
    %1257 = vmatprep.subr.bf16.mxu0 0
    %1258 = vmatpush1.bf16.msra.mxu0 %v1223
    %1259 = vmatprep.subr.bf16.mxu0 0
    %1260 = vmatpush1.bf16.msra.mxu0 %v1224
    %1261 = vmatprep.subr.bf16.mxu0 0
    %1262 = vmatpush1.bf16.msra.mxu0 %v1225
    %1263 = vmatprep.subr.bf16.mxu0 0
    %1264 = vmatpush1.bf16.msra.mxu0 %v1226
    %1265 = vmatprep.subr.bf16.mxu0 0
    %1266 = vmatpush1.bf16.msra.mxu0 %v1227
    %1267 = vmatprep.subr.bf16.mxu0 0
    %1268 = vmatpush1.bf16.msra.mxu0 %v1228
    %1269 = vmatprep.subr.bf16.mxu0 0
    %1270 = vmatpush1.bf16.msra.mxu0 %v1229
    %1271 = vmatprep.subr.bf16.mxu0 0
    %1272 = vmatpush1.bf16.msra.mxu0 %v1230
    %1273 = vmatprep.subr.bf16.mxu0 0
    %1274 = vmatpush1.bf16.msra.mxu0 %v1231
    %1275 = vmatprep.subr.bf16.mxu0 0
    %1276 = vmatpush1.bf16.msra.mxu0 %v1232
    %1277 = vmatprep.subr.bf16.mxu0 0
    %1278 = vmatpush1.bf16.msra.mxu0 %v1233
    %1279 = vmatprep.subr.bf16.mxu0 0
    %1280 = vmatpush1.bf16.msra.mxu0 %v1234
    %1281 = vmatprep.subr.bf16.mxu0 0
    %1282 = vmatpush1.bf16.msra.mxu0 %v1235
    %1283 = vmatprep.subr.bf16.mxu0 0
    %1284 = vmatpush1.bf16.msra.mxu0 %v1236
    %1285 = vmatprep.mubr.bf16.mxu0 %v1117
    %1286 = vmatmul.mubr.bf16.gmra.mrb[0].mxu0 %v1116
    %v1287 = vpop.f32.mrb[0].mxu0
    %v1288 = vadd.f32 %v1155, %v1287
    %v1289 = vpop.f32.mrb[0].mxu0
    %v1290 = vpop.f32.mrb[0].mxu0
    %v1291 = vpop.f32.mrb[0].mxu0
    %1292 = vdwg.mxu0
    %1293 = vst [vmem:[#allocation10] sm:$0xff] %v1288
    // Predicated region
    $region46: #{tpu_custom_call.1} parent=1 // pred_check
      _
    $region47: #{tpu_custom_call.1} parent=1 // pred_check_branch
      %1295 = sbr.rel (0) target = $region49
    $region48: #{tpu_custom_call.1} parent=1 // pred_region
      %s1297 = ssub.s32 128, 128
      %1298 = vsyncadd [#allocation4], %s1297
      %s1300 = sshll.u32 [#allocation10], 4
      %s1301 = int_to_ptr.vmem [resolvable:$true] %s1300
      %1303 = dma.vmem_to_hbm [thread:$0]  %s1301, 128, %s7, [#allocation4]
    $region49: #{tpu_custom_call.1} parent=1 // pred_fallthru
      _
    // Predicated region
    $region50: #{tpu_custom_call.1} parent=1 // pred_check
      _
    $region51: #{tpu_custom_call.1} parent=1 // pred_check_branch
      %1305 = sbr.rel (0) target = $region53
    $region52: #{tpu_custom_call.1} parent=1 // pred_region
      %1306 = dma.done [#allocation4], 128
    $region53: #{tpu_custom_call.1} parent=1 // pred_fallthru
      _
    %1307 = vsyncpa [#allocation3], 1
    %1308 = vsyncpa [#allocation6], 1
    %1309 = vsyncpa [#allocation9], 1
    %1310 = vsyncpa [#allocation4], 1

</llo_original>
